<compile_context>
chip_gen: v7x
topology: tpu7x:2x2x1
jax: 0.10.0
libtpu: 0.0.40
codegen_flags: <defaults>
</compile_context>

<pallas_src>
import functools

import jax
import jax.numpy as jnp
from jax.experimental import pallas as pl
from jax.experimental.pallas import tpu as pltpu


def _spatial_dropout_kernel(x_ref, mask_ref, o_ref):
    # x_ref/o_ref: (tR, C_pad) tile in VMEM; mask_ref: (1, C_pad) broadcast over rows.
    o_ref[...] = x_ref[...] * mask_ref[...]


def _round_up(n, m):
    return (n + m - 1) // m * m


@functools.partial(jax.jit, static_argnames=("drop_probability", "training"))
def spatial_dropout(x, key, *, drop_probability: float, training: bool = True):
    """Pallas implementation of SpatialDropout.forward.

    x:   (B, T, C) array; C == x.shape[2] is the channel axis (as in the PyTorch module).
    key: PRNG key for the per-channel Bernoulli mask (training mode only).
    Returns (out, mask) with mask of shape (C,) in x.dtype.
    """
    B, T, C = x.shape
    keep_p = 1.0 - drop_probability

    if not training:
        # Eval path: pure scalar scale -- no mask DMA, no custom kernel needed.
        mask = jnp.full((C,), keep_p, dtype=x.dtype)
        return x * jnp.asarray(keep_p, dtype=x.dtype), mask

    # Per-channel Bernoulli(keep_p), shared across batch & seq; this matches
    # torch.bernoulli(torch.ones(C) * (1 - p)).expand(x.shape) in the reference module.
    mask = jax.random.bernoulli(key, p=keep_p, shape=(C,)).astype(x.dtype)

    itemsize = jnp.dtype(x.dtype).itemsize
    sublane = {4: 8, 2: 16, 1: 32}.get(itemsize, 8)  # sublane packing per dtype width

    # Flatten to a row-tiled 2-D problem and keep the lane (last) dim dense.
    R = B * T
    C_pad = _round_up(C, 128)
    x2 = x.reshape(R, C)
    mask2 = mask.reshape(1, C)
    if C_pad != C:
        # Zero-pad channels to a lane-dense width; padded lanes are sliced off below.
        x2 = jnp.pad(x2, ((0, 0), (0, C_pad - C)))
        mask2 = jnp.pad(mask2, ((0, 0), (0, C_pad - C)))

    # Row-tile size from a byte budget: ~2 MiB per tile => ~8 MiB double-buffered
    # in+out, comfortably inside every generation's scoped-VMEM default.
    target_tile_bytes = 2 * 1024 * 1024
    rows_budget = max(
        sublane, (target_tile_bytes // (C_pad * itemsize)) // sublane * sublane
    )
    tR = R if R <= rows_budget else rows_budget  # full-dim block when R is small

    grid = (pl.cdiv(R, tR),)
    tile_bytes = tR * C_pad * itemsize
    # Explicit scoped-VMEM limit with ~2x headroom over the double-buffered working set,
    # floored at 16 MiB and capped at 32 MiB (safe on v5e/v6e/v7x alike).
    vmem_bytes = int(
        min(max(2 * (4 * tile_bytes + C_pad * itemsize), 16 << 20), 32 << 20)
    )

    out2 = pl.pallas_call(
        _spatial_dropout_kernel,
        out_shape=jax.ShapeDtypeStruct((R, C_pad), x.dtype),
        grid_spec=pltpu.PrefetchScalarGridSpec(
            num_scalar_prefetch=0,
            grid=grid,
            in_specs=[
                pl.BlockSpec((tR, C_pad), lambda i: (i, 0)),
                pl.BlockSpec((1, C_pad), lambda i: (0, 0)),
            ],
            out_specs=pl.BlockSpec((tR, C_pad), lambda i: (i, 0)),
        ),
        # NOTE: input_output_aliases={0: 0} would halve the HBM footprint when x is
        # donatable; left off so callers can keep using x after the call.
        compiler_params=pltpu.CompilerParams(
            dimension_semantics=("parallel",),
            vmem_limit_bytes=vmem_bytes,
        ),
    )(x2, mask2)

    out = out2[:, :C].reshape(B, T, C)
    return out, mask


if __name__ == "__main__":
    key = jax.random.PRNGKey(0)
    xkey, mkey, xkey2 = jax.random.split(key, 3)

    p = 0.3

    # Small shapes consistent with the module's (batch, seq, channels) usage.
    B, T, C = 2, 8, 128
    x = jax.random.normal(xkey, (B, T, C), dtype=jnp.float32)

    # Training mode: per-channel Bernoulli mask applied without rescaling (Pallas path).
    out_train, mask = spatial_dropout(x, mkey, drop_probability=p, training=True)
    out_train = jax.block_until_ready(out_train)

    # Eval mode: simple scaling by (1 - p) (scalar path, per perf review).
    out_eval, _ = spatial_dropout(x, mkey, drop_probability=p, training=False)
    out_eval = jax.block_until_ready(out_eval)

    ref_train = x * mask.reshape(1, 1, C)
    ref_eval = x * (1.0 - p)
    assert jnp.allclose(out_train, ref_train, atol=1e-6), "training-mode mismatch"
    assert jnp.allclose(out_eval, ref_eval, atol=1e-6), "eval-mode mismatch"

    # Second check: non-lane-aligned channel count exercises the channel-padding path.
    B2, T2, C2 = 2, 10, 96
    x_odd = jax.random.normal(xkey2, (B2, T2, C2), dtype=jnp.float32)
    out_odd, mask_odd = spatial_dropout(x_odd, mkey, drop_probability=p, training=True)
    out_odd = jax.block_until_ready(out_odd)
    assert jnp.allclose(
        out_odd, x_odd * mask_odd.reshape(1, 1, C2), atol=1e-6
    ), "padded-channel mismatch"

    print("KERNEL_OK")
</pallas_src>

<mosaic_0001>
module attributes {stable_mosaic.version = 11 : i64} {
  func.func @_spatial_dropout_kernel(%arg0: i32, %arg1: memref<16x128xf32, #tpu.memory_space<vmem>>, %arg2: memref<1x128xf32, #tpu.memory_space<vmem>>, %arg3: memref<16x128xf32, #tpu.memory_space<vmem>>) attributes {dimension_semantics = [#tpu.dimension_semantics<parallel>], iteration_bounds = array<i64: 1>, scalar_prefetch = 0 : i64, scratch_operands = 0 : i64, tpu.core_type = #tpu.core_type<tc>, window_params = [{transform_indices = @transform_0, window_bounds = array<i64: 16, 128>}, {pipeline_mode = #tpu.pipeline_mode<synchronous>, transform_indices = @transform_1, window_bounds = array<i64: 1, 128>}, {transform_indices = @transform_2, window_bounds = array<i64: 16, 128>}]} {
    %c0 = arith.constant 0 : index
    %c0_0 = arith.constant 0 : index
    %0 = vector.load %arg1[%c0, %c0_0] : memref<16x128xf32, #tpu.memory_space<vmem>>, vector<16x128xf32>
    %c0_1 = arith.constant 0 : index
    %c0_2 = arith.constant 0 : index
    %1 = vector.load %arg2[%c0_1, %c0_2] : memref<1x128xf32, #tpu.memory_space<vmem>>, vector<1x128xf32>
    %2 = vector.broadcast %1 : vector<1x128xf32> to vector<16x128xf32>
    %3 = arith.mulf %0, %2 : vector<16x128xf32>
    %c0_3 = arith.constant 0 : index
    %c0_4 = arith.constant 0 : index
    %4 = vector.load %arg3[%c0_3, %c0_4] : memref<16x128xf32, #tpu.memory_space<vmem>>, vector<16x128xf32>
    tpu.vector_store %arg3[%c0_3, %c0_4], %3 {strides = array<i32>} : memref<16x128xf32, #tpu.memory_space<vmem>>, vector<16x128xf32>,
    return
  }
  func.func @transform_0(%arg0: i32) -> (i32, i32) {
    %c0_i32 = arith.constant 0 : i32
    %c0_i32_0 = arith.constant 0 : i32
    return %arg0, %c0_i32 : i32, i32
  }
  func.func @transform_1(%arg0: i32) -> (i32, i32) {
    %c0_i32 = arith.constant 0 : i32
    %c0_i32_0 = arith.constant 0 : i32
    %c0_i32_1 = arith.constant 0 : i32
    return %c0_i32, %c0_i32_0 : i32, i32
  }
  func.func @transform_2(%arg0: i32) -> (i32, i32) {
    %c0_i32 = arith.constant 0 : i32
    %c0_i32_0 = arith.constant 0 : i32
    return %arg0, %c0_i32 : i32, i32
  }
}

</mosaic_0001>

<llo_original>
// kernel: spatial_dropout.1
$region0: #{spatial_dropout.1}
  #allocation0 [shape = 'u32[]', space=smem, size = 0x4, offset = 0x4, fixed_abs, tag = 'smem constant byte address 0x4 - core index']
  #allocation1 [shape = 'u32[144,128]{1,0:T(1,128)}', space=vmem, size = 0x12000, scoped, tag = 'internal scratch']
  %s0 = inlined_call_operand.vmem [shape: f32[16,128], index: 0, kind: input, shape index: {}]
  %s1 = inlined_call_operand.vmem [shape: f32[1,128], index: 1, kind: input, shape index: {}]
  %s2 = inlined_call_operand.hbm [shape: f32[16,128], index: 2, kind: output, shape index: {}]
  %s3 = sld [smem:[#allocation0]]
  $region18: #{spatial_dropout.1} parent=0
    _
  %s5 = ssub.s32 1, %s3
  %s6 = scalar_select 0, %s5, %s3
  $region1: #{spatial_dropout.1} parent=0
    #allocation2 [shape = 'u8[8192]{0}', space=vmem, size = 0x2000, scoped, tag = 'output window, operand 0, single buffered']
    #allocation3 [shape = 's32[1]{0}', space=sflag, size = 0x4, scoped, tag = 'scoped memory for spatial_dropout.1']
    %7 = vsyncpa [#allocation3], 0
    // Predicated region
    $region2: #{spatial_dropout.1} parent=1 // pred_check
      _
    $region3: #{spatial_dropout.1} parent=1 // pred_check_branch
      %9 = sbr.rel (0) target = $region5
    $region4: #{spatial_dropout.1} parent=1 // pred_region
      _
    $region5: #{spatial_dropout.1} parent=1 // pred_fallthru
      _
    // Predicated region
    $region6: #{spatial_dropout.1} parent=1 // pred_check
      _
    $region7: #{spatial_dropout.1} parent=1 // pred_check_branch
      %11 = sbr.rel (0) target = $region9
    $region8: #{spatial_dropout.1} parent=1 // pred_region
      _
    $region9: #{spatial_dropout.1} parent=1 // pred_fallthru
      _
    %v12 = vld [vmem:[%s0] sm:$0xff]
    %v13 = vld [vmem:[%s0 + $0x8] sm:$0xff]
    %v14 = vld [vmem:[%s1] sm:$0x1]
    %v16 = vlaneseq
    %v17 = vshrl.u32 %v16, 7
    %v18 = vsub.s32 0, %v17
    %v19 = vrot.slane %v14, %v18
    %v21 = vmul.f32 %v12, %v19
    %v22 = vmul.f32 %v13, %v19
    %23 = vst [vmem:[#allocation2] sm:$0xff] %v21
    %24 = vst [vmem:[#allocation2 + $0x8] sm:$0xff] %v22
    // Predicated region
    $region10: #{spatial_dropout.1} parent=1 // pred_check
      _
    $region11: #{spatial_dropout.1} parent=1 // pred_check_branch
      %26 = sbr.rel (0) target = $region13
    $region12: #{spatial_dropout.1} parent=1 // pred_region
      %s28 = ssub.s32 256, 256
      %29 = vsyncadd [#allocation3], %s28
      %s30 = sshll.u32 [#allocation2], 4
      %s31 = int_to_ptr.vmem [resolvable:$true] %s30
      %36 = dma.vmem_to_hbm [thread:$0]  %s31, 256, %s2, [#allocation3], 128, 128, 8
    $region13: #{spatial_dropout.1} parent=1 // pred_fallthru
      _
    // Predicated region
    $region14: #{spatial_dropout.1} parent=1 // pred_check
      _
    $region15: #{spatial_dropout.1} parent=1 // pred_check_branch
      %38 = sbr.rel (0) target = $region17
    $region16: #{spatial_dropout.1} parent=1 // pred_region
      %39 = dma.done [#allocation3], 256
    $region17: #{spatial_dropout.1} parent=1 // pred_fallthru
      _
    %40 = vsyncpa [#allocation3], 1

</llo_original>
